<compile_context>
chip_gen: v7x
topology: tpu7x:2x2x1
jax: 0.10.0
libtpu: 0.0.40
codegen_flags: <defaults>
</compile_context>

<pallas_src>
import jax
import jax.numpy as jnp
from jax.experimental import pallas as pl
from jax.experimental.pallas import tpu as pltpu


def _drop_path_kernel(scale_ref, x_ref, o_ref):
    # scale_ref: (TB, 1) per-sample scale in x.dtype (0 or 1/keep_prob)
    # x_ref / o_ref: (TB, TILE_N) lane-dense tile
    o_ref[...] = x_ref[...] * scale_ref[...]


def _cdiv(a, b):
    return -(-a // b)


def _round_up(n, m):
    return _cdiv(n, m) * m


def _default_block_bytes():
    """Target block bytes: ~4-8 MiB, scaled to the chip's VMEM when queryable."""
    try:
        vmem = int(pltpu.get_tpu_info().vmem_capacity_bytes)
    except Exception:
        vmem = 64 << 20  # conservative fallback (v7x per-TC VMEM)
    # 2 arrays x 2 pipeline buffers of one block must stay far under the
    # per-core VMEM budget; vmem // 16 leaves ~4x headroom on every
    # generation (v5e/v6e 128 MiB -> 8 MiB blocks, v7x 64 MiB/TC -> 4 MiB).
    return int(min(8 << 20, max(2 << 20, vmem // 16)))


def _choose_tiles(B, N, itemsize, target_block_bytes):
    """Pick (TB, TILE_N) for the flat (B, N) view."""
    packing = max(1, 4 // itemsize)          # elems per 32-bit word
    sub = 8 * packing                        # packed sublane tile: 8/16/32 rows
    n_pad = _round_up(N, 128)

    # Start from one packed sublane group of rows (or all of B if smaller —
    # block dim == full array dim is always allowed).
    tb = sub if B >= sub else B

    # Lane-dense column cap derived from the byte budget for this tb.
    cap = max(128, (target_block_bytes // (tb * itemsize)) // 128 * 128)

    if n_pad <= cap:
        # Whole flattened feature dim fits in one block column: keep N whole
        # and grow the row count (in sublane-tile multiples) toward the byte
        # budget so small-N shapes don't degenerate to ~24 KiB blocks.
        tile_n = n_pad
        if B > tb:
            want_rows = max(sub, target_block_bytes // (tile_n * itemsize))
            tb = min(B, _round_up(want_rows, sub))  # multiple of sub, or full B
    else:
        # Even split of N so a ragged tail (e.g. N = cap + 128) never costs an
        # extra nearly-empty grid column.
        n_cols = _cdiv(N, cap)
        tile_n = _round_up(_cdiv(N, n_cols), 128)

    # v7x has two TensorCores: avoid a (1, 1) grid when B can be split.
    if _cdiv(B, tb) == 1 and _cdiv(n_pad, tile_n) == 1 and B >= 2 * sub:
        tb = _round_up(_cdiv(B, 2), sub)

    return int(tb), int(tile_n)


def drop_path(x, drop_prob: float = 0.0, training: bool = False, *, key=None,
              donate: bool = False):
    """Stochastic depth per sample. Matches torch: y = x / keep_prob * floor(keep_prob + U)."""
    if drop_prob == 0.0 or not training:
        return x
    if not (0.0 <= drop_prob < 1.0):
        # drop_prob == 1.0 would give keep_prob == 0 and a 0/0 = NaN scale
        # (the torch reference has the same div-by-zero failure mode).
        raise ValueError(f"drop_prob must be in [0, 1), got {drop_prob}")
    if key is None:
        # NOTE: without an explicit key every call draws the identical mask;
        # pass a fresh key per step in real training loops.
        key = jax.random.PRNGKey(0)

    keep_prob = 1.0 - drop_prob
    B = x.shape[0]

    # Per-sample binary mask, exactly as torch: floor(keep_prob + rand()).
    # TODO(synk): the B scalar RNG draws stay as plain-JAX glue (in-kernel
    # pltpu.prng buys nothing for a handful of scalars).
    u = jax.random.uniform(key, (B,), dtype=jnp.float32)
    mask = jnp.floor(keep_prob + u)
    # NOTE: the divide is performed in f32 and then cast to x.dtype (so for
    # bf16 the 1/keep_prob factor is rounded once before the multiply) — this
    # matches torch's in-dtype x.div(keep_prob) semantics.
    scale = (mask / keep_prob).astype(x.dtype).reshape(B, 1)

    orig_shape = x.shape
    x2 = x.reshape(B, -1)                    # free bitcast — no padding pass
    N = x2.shape[1]
    itemsize = x2.dtype.itemsize

    tb, tile_n = _choose_tiles(B, N, itemsize, _default_block_bytes())
    # Grid axis order is load-bearing: N must stay innermost so the (tb, 1)
    # scale block index (i, 0) is constant across the inner loop and Pallas
    # skips re-fetching it on every step.
    grid = (pl.cdiv(B, tb), pl.cdiv(N, tile_n))

    block_bytes = tb * tile_n * itemsize
    # Explicit scoped-VMEM budget: covers 2 arrays x 2 pipeline buffers with
    # >2x headroom, yet stays below v7x's 64 MiB physical per-TC VMEM (and far
    # below v5e/v6e's 128 MiB).
    vmem_limit = int(min(48 << 20, max(32 << 20, 5 * block_bytes)))

    cost = pl.CostEstimate(
        flops=B * N,
        transcendentals=0,
        bytes_accessed=2 * B * N * itemsize + B * itemsize,
    )

    out = pl.pallas_call(
        _drop_path_kernel,
        out_shape=jax.ShapeDtypeStruct((B, N), x.dtype),
        grid=grid,
        in_specs=[
            pl.BlockSpec((tb, 1), lambda i, j: (i, 0)),        # per-sample scale
            pl.BlockSpec((tb, tile_n), lambda i, j: (i, j)),   # x tile
        ],
        out_specs=pl.BlockSpec((tb, tile_n), lambda i, j: (i, j)),
        compiler_params=pltpu.CompilerParams(
            dimension_semantics=("parallel", "parallel"),
            vmem_limit_bytes=vmem_limit),
        cost_estimate=cost,
        input_output_aliases=({1: 0} if donate else {}),
    )(scale, x2)

    return out.reshape(orig_shape)


class DropPath:
    """Drop paths (Stochastic Depth) per sample (main path of residual blocks)."""

    def __init__(self, drop_prob=None):
        self.drop_prob = drop_prob if drop_prob is not None else 0.0
        self.training = True

    def __call__(self, x, *, key=None):
        return drop_path(x, self.drop_prob, self.training, key=key)


if __name__ == "__main__":
    root = jax.random.PRNGKey(0)
    k_x, k_mask, k_x2, k_m2, k_x3, k_m3, k_x4, k_m4 = jax.random.split(root, 8)

    drop_prob = 0.3
    keep_prob = 1.0 - drop_prob

    def reference(x, key):
        # Pure-JAX reference with identical mask draw / torch semantics.
        u = jax.random.uniform(key, (x.shape[0],), dtype=jnp.float32)
        m = jnp.floor(keep_prob + u).astype(x.dtype)
        bshape = (x.shape[0],) + (1,) * (x.ndim - 1)
        return x / jnp.asarray(keep_prob, x.dtype) * m.reshape(bshape)

    module = DropPath(drop_prob)
    module.training = True

    # Case 1: module-sized NCHW input (N = 1024, multiple of 128).
    x = jax.random.normal(k_x, (2, 4, 16, 16), dtype=jnp.float32)
    y = jax.block_until_ready(module(x, key=k_mask))
    assert y.shape == x.shape
    assert jnp.allclose(y, reference(x, k_mask), atol=1e-6, rtol=1e-6)

    # Case 2: ragged N (675, not a multiple of 128) and B not a multiple of 8.
    x2 = jax.random.normal(k_x2, (5, 3, 15, 15), dtype=jnp.float32)
    y2 = jax.block_until_ready(module(x2, key=k_m2))
    assert jnp.allclose(y2, reference(x2, k_m2), atol=1e-6, rtol=1e-6)

    # Case 3: bf16 input (native-dtype multiply path).
    x3 = jax.random.normal(k_x3, (10, 2, 8, 8), dtype=jnp.bfloat16)
    y3 = jax.block_until_ready(module(x3, key=k_m3))
    ref3 = reference(x3.astype(jnp.float32), k_m3)
    assert jnp.allclose(y3.astype(jnp.float32), ref3, atol=2e-2, rtol=2e-2)

    # Case 4: larger B with small N — exercises the grown-TB aspect-ratio fix
    # and the B-axis split that keeps both v7x TensorCores busy.
    x4 = jax.random.normal(k_x4, (16, 4, 8, 8), dtype=jnp.float32)
    y4 = jax.block_until_ready(module(x4, key=k_m4))
    assert jnp.allclose(y4, reference(x4, k_m4), atol=1e-6, rtol=1e-6)

    # Eval / drop_prob=0 path is identity.
    module.training = False
    y_eval = jax.block_until_ready(module(x, key=k_mask))
    assert jnp.array_equal(y_eval, x)

    print("KERNEL_OK")
</pallas_src>

<mosaic_0001>
module attributes {stable_mosaic.version = 11 : i64} {
  func.func @_drop_path_kernel(%arg0: i32, %arg1: i32, %arg2: memref<2x1xf32, #tpu.memory_space<vmem>>, %arg3: memref<2x1024xf32, #tpu.memory_space<vmem>>, %arg4: memref<2x1024xf32, #tpu.memory_space<vmem>>) attributes {dimension_semantics = [#tpu.dimension_semantics<parallel>, #tpu.dimension_semantics<parallel>], iteration_bounds = array<i64: 1, 1>, scalar_prefetch = 0 : i64, scratch_operands = 0 : i64, tpu.core_type = #tpu.core_type<tc>, window_params = [{transform_indices = @transform_0, window_bounds = array<i64: 2, 1>}, {transform_indices = @transform_1, window_bounds = array<i64: 2, 1024>}, {transform_indices = @transform_2, window_bounds = array<i64: 2, 1024>}]} {
    %c0 = arith.constant 0 : index
    %c0_0 = arith.constant 0 : index
    %0 = vector.load %arg3[%c0, %c0_0] : memref<2x1024xf32, #tpu.memory_space<vmem>>, vector<2x1024xf32>
    %c0_1 = arith.constant 0 : index
    %c0_2 = arith.constant 0 : index
    %1 = vector.load %arg2[%c0_1, %c0_2] : memref<2x1xf32, #tpu.memory_space<vmem>>, vector<2x1xf32>
    %2 = vector.broadcast %1 : vector<2x1xf32> to vector<2x1024xf32>
    %3 = arith.mulf %0, %2 : vector<2x1024xf32>
    %c0_3 = arith.constant 0 : index
    %c0_4 = arith.constant 0 : index
    %4 = vector.load %arg4[%c0_3, %c0_4] : memref<2x1024xf32, #tpu.memory_space<vmem>>, vector<2x1024xf32>
    tpu.vector_store %arg4[%c0_3, %c0_4], %3 {strides = array<i32>} : memref<2x1024xf32, #tpu.memory_space<vmem>>, vector<2x1024xf32>,
    return
  }
  func.func @transform_0(%arg0: i32, %arg1: i32) -> (i32, i32) {
    %c0_i32 = arith.constant 0 : i32
    %c0_i32_0 = arith.constant 0 : i32
    return %arg0, %c0_i32 : i32, i32
  }
  func.func @transform_1(%arg0: i32, %arg1: i32) -> (i32, i32) {
    %c0_i32 = arith.constant 0 : i32
    return %arg0, %arg1 : i32, i32
  }
  func.func @transform_2(%arg0: i32, %arg1: i32) -> (i32, i32) {
    %c0_i32 = arith.constant 0 : i32
    return %arg0, %arg1 : i32, i32
  }
}

</mosaic_0001>

<llo_original>
// kernel: tpu_custom_call.1
$region0: #{tpu_custom_call.1}
  #allocation0 [shape = 'u32[]', space=smem, size = 0x4, offset = 0x4, fixed_abs, tag = 'smem constant byte address 0x4 - core index']
  #allocation1 [shape = 'u32[144,128]{1,0:T(1,128)}', space=vmem, size = 0x12000, scoped, tag = 'internal scratch']
  %s0 = inlined_call_operand.vmem [shape: f32[2,1], index: 0, kind: input, shape index: {}]
  %s1 = inlined_call_operand.hbm [shape: f32[2,1024], index: 1, kind: input, shape index: {}]
  %s2 = inlined_call_operand.hbm [shape: f32[2,1024], index: 2, kind: output, shape index: {}]
  %s3 = sld [smem:[#allocation0]]
  $region22: #{tpu_custom_call.1} parent=0
    _
  %s5 = ssub.s32 1, %s3
  %s6 = scalar_select 0, %s5, %s3
  $region1: #{tpu_custom_call.1} parent=0
    #allocation2 [shape = 'u8[8192]{0}', space=vmem, size = 0x2000, scoped, tag = 'input window, operand 1, single buffered']
    #allocation3 [shape = 's32[1]{0}', space=sflag, size = 0x4, scoped, tag = 'scoped memory for tpu_custom_call.1']
    #allocation4 [shape = 's32[1]{0}', space=sflag, size = 0x4, scoped, tag = 'scoped memory for tpu_custom_call.1']
    #allocation5 [shape = 'u8[8192]{0}', space=vmem, size = 0x2000, scoped, tag = 'output window, operand 0, single buffered']
    %7 = vsyncpa [#allocation3], 0
    %8 = vsyncpa [#allocation4], 0
    // Predicated region
    $region2: #{tpu_custom_call.1} parent=1 // pred_check
      _
    $region3: #{tpu_custom_call.1} parent=1 // pred_check_branch
      %10 = sbr.rel (0) target = $region5
    $region4: #{tpu_custom_call.1} parent=1 // pred_region
      _
    $region5: #{tpu_custom_call.1} parent=1 // pred_fallthru
      _
    // Predicated region
    $region6: #{tpu_custom_call.1} parent=1 // pred_check
      _
    $region7: #{tpu_custom_call.1} parent=1 // pred_check_branch
      %12 = sbr.rel (0) target = $region9
    $region8: #{tpu_custom_call.1} parent=1 // pred_region
      %s14 = ssub.s32 256, 256
      %15 = vsyncadd [#allocation3], %s14
      %s17 = sshll.u32 [#allocation2], 4
      %s18 = int_to_ptr.vmem [resolvable:$true] %s17
      %20 = dma.hbm_to_vmem [thread:$0]  %s1, 256, %s18, [#allocation3]
    $region9: #{tpu_custom_call.1} parent=1 // pred_fallthru
      _
    // Predicated region
    $region10: #{tpu_custom_call.1} parent=1 // pred_check
      _
    $region11: #{tpu_custom_call.1} parent=1 // pred_check_branch
      %22 = sbr.rel (0) target = $region13
    $region12: #{tpu_custom_call.1} parent=1 // pred_region
      %23 = dma.done [#allocation3], 256
    $region13: #{tpu_custom_call.1} parent=1 // pred_fallthru
      _
    %v24 = vld [vmem:[#allocation2] sm:$0xff]
    %v25 = vld [vmem:[#allocation2 + $0x8] sm:$0xff]
    %v26 = vld [vmem:[%s0] sm:$0x3]
    %28 = vset.pattern.permute.xlu0 0
    %29 = vperm.xlu0 %28, %v26
    %v30 = vpop.permute.xlu0 %29
    %v32 = vunpack.c.l.s4 269488144
    %v33 = vunpack.c.0.s8 %v32
    %v34 = vlaneseq
    %v35 = vshrl.u32 %v34, 7
    %v36 = vsub.s32 %v33, %v35
    %v37 = vrot.slane %v30, %v36
    %v39 = vmul.f32 %v24, %v37
    %v40 = vmul.f32 %v25, %v37
    %41 = vst [vmem:[#allocation5] sm:$0xff] %v39
    %42 = vst [vmem:[#allocation5 + $0x8] sm:$0xff] %v40
    // Predicated region
    $region14: #{tpu_custom_call.1} parent=1 // pred_check
      _
    $region15: #{tpu_custom_call.1} parent=1 // pred_check_branch
      %44 = sbr.rel (0) target = $region17
    $region16: #{tpu_custom_call.1} parent=1 // pred_region
      %s46 = ssub.s32 256, 256
      %47 = vsyncadd [#allocation4], %s46
      %s49 = sshll.u32 [#allocation5], 4
      %s50 = int_to_ptr.vmem [resolvable:$true] %s49
      %52 = dma.vmem_to_hbm [thread:$0]  %s50, 256, %s2, [#allocation4]
    $region17: #{tpu_custom_call.1} parent=1 // pred_fallthru
      _
    // Predicated region
    $region18: #{tpu_custom_call.1} parent=1 // pred_check
      _
    $region19: #{tpu_custom_call.1} parent=1 // pred_check_branch
      %54 = sbr.rel (0) target = $region21
    $region20: #{tpu_custom_call.1} parent=1 // pred_region
      %55 = dma.done [#allocation4], 256
    $region21: #{tpu_custom_call.1} parent=1 // pred_fallthru
      _
    %56 = vsyncpa [#allocation3], 1
    %57 = vsyncpa [#allocation4], 1

</llo_original>
